<compile_context>
chip_gen: v5e
topology: v5e:2x2
jax: 0.10.0
libtpu: 0.0.40
codegen_flags: <defaults>
</compile_context>

<pallas_src>
import jax
import jax.numpy as jnp
from jax import lax
from jax.experimental import pallas as pl
from jax.experimental.pallas import tpu as pltpu

BN_EPS = 1e-5


def _mlp_kernel(x_ref, w0_ref, w1_ref, w2_ref, vec_ref, o_ref):
    """3-layer MLP: (Linear -> BatchNorm1d(batch stats) -> ReLU) x2 then Linear.

    vec_ref rows: 0=b0, 1=g0, 2=be0, 3=b1, 4=g1, 5=be1, 6=b2 (lane-padded), 7=zeros.
    """
    out_dim = o_ref.shape[-1]
    vecs = vec_ref[...]                       # (8, W) f32, single tiny load

    def lin_bn_relu(h, w, b, gamma, beta):
        # MXU matmul, f32 accumulation.
        y = jnp.dot(h, w, preferred_element_type=jnp.float32) + b
        inv_n = 1.0 / y.shape[0]
        # One pass over the (N,F) tile: sum(y) and sum(y*y) together.
        s1 = jnp.sum(y, axis=0, keepdims=True)
        s2 = jnp.sum(y * y, axis=0, keepdims=True)
        mean = s1 * inv_n
        var = s2 * inv_n - mean * mean        # eps below guards cancellation
        # Fold BN into per-feature scale/shift -> one fma + one max per element.
        a = gamma * lax.rsqrt(var + BN_EPS)   # rsqrt on EUP, off the VPU path
        c = beta - mean * a
        return jnp.maximum(y * a + c, 0.0)

    h = x_ref[...]                            # already f32 from prepare step
    h = lin_bn_relu(h, w0_ref[...], vecs[0:1, :], vecs[1:2, :], vecs[2:3, :])
    h = lin_bn_relu(h, w1_ref[...], vecs[3:4, :], vecs[4:5, :], vecs[5:6, :])
    o_ref[...] = (jnp.dot(h, w2_ref[...], preferred_element_type=jnp.float32)
                  + vecs[6:7, :out_dim])


def prepare_params(params):
    """One-time prep (NOT in the per-call hot path):
    transpose Linear weights to (in, out), cast to f32, and pack the seven
    bias/BN vectors into a single (8, W) slab (W = max(hidden, out), lane-padded)."""
    hidden_dim = params["w0"].shape[0]
    output_dim = params["w2"].shape[0]
    width = max(hidden_dim, output_dim)

    def pad_row(v):
        v = jnp.asarray(v, jnp.float32).reshape(-1)
        return jnp.pad(v, (0, width - v.shape[0]))

    rows = [pad_row(params[k]) for k in ("b0", "g0", "be0", "b1", "g1", "be1", "b2")]
    rows.append(jnp.zeros((width,), jnp.float32))          # pad to 8 sublanes
    vecs = jnp.stack(rows, axis=0)                         # (8, W)

    return {
        "w0": jnp.asarray(params["w0"], jnp.float32).T,    # (in,  hidden)
        "w1": jnp.asarray(params["w1"], jnp.float32).T,    # (hid, hidden)
        "w2": jnp.asarray(params["w2"], jnp.float32).T,    # (hid, out)
        "vecs": vecs,
    }


@jax.jit
def mlp_forward(x, prepped):
    """x: (N, input_dim) f32; prepped: output of prepare_params."""
    n = x.shape[0]
    out_dim = prepped["w2"].shape[1]
    # Whole problem fits in VMEM -> full-array blocks, no grid.
    # NOTE: out_dim=8 < 128 means a masked partial store; acceptable at this size.
    # TODO(synk): if batch/out_dim grow, add a batch grid ("parallel") and lane-pad the output.
    return pl.pallas_call(
        _mlp_kernel,
        out_shape=jax.ShapeDtypeStruct((n, out_dim), jnp.float32),
        in_specs=[pl.BlockSpec(memory_space=pltpu.VMEM)] * 5,
        out_specs=pl.BlockSpec(memory_space=pltpu.VMEM),
    )(x.astype(jnp.float32), prepped["w0"], prepped["w1"], prepped["w2"],
      prepped["vecs"])


def _torch_like_linear_init(key, out_dim, in_dim):
    """Deterministic init mirroring nn.Linear default U(-1/sqrt(fan_in), 1/sqrt(fan_in))."""
    kw, kb = jax.random.split(key)
    bound = 1.0 / jnp.sqrt(jnp.float32(in_dim))
    w = jax.random.uniform(kw, (out_dim, in_dim), jnp.float32, -bound, bound)
    b = jax.random.uniform(kb, (out_dim,), jnp.float32, -bound, bound)
    return w, b


def _reference_forward(x, params):
    """Pure-JAX reference (same math as the PyTorch module in training mode)."""
    def lin(h, w, b):
        return h @ w.T + b

    def bn(h, g, be):
        mean = jnp.mean(h, axis=0, keepdims=True)
        var = jnp.mean((h - mean) ** 2, axis=0, keepdims=True)
        return (h - mean) / jnp.sqrt(var + BN_EPS) * g + be

    h = x
    h = jax.nn.relu(bn(lin(h, params["w0"], params["b0"]), params["g0"], params["be0"]))
    h = jax.nn.relu(bn(lin(h, params["w1"], params["b1"]), params["g1"], params["be1"]))
    return lin(h, params["w2"], params["b2"])


if __name__ == "__main__":
    # MLP(num_layers=3, input_dim=16, hidden_dim=32, output_dim=8), batch N=8
    num_layers, input_dim, hidden_dim, output_dim = 3, 16, 32, 8
    n = 8

    key = jax.random.PRNGKey(0)
    k_x, k_l0, k_l1, k_l2 = jax.random.split(key, 4)

    w0, b0 = _torch_like_linear_init(k_l0, hidden_dim, input_dim)
    w1, b1 = _torch_like_linear_init(k_l1, hidden_dim, hidden_dim)
    w2, b2 = _torch_like_linear_init(k_l2, output_dim, hidden_dim)

    params = {
        "w0": w0, "b0": b0,
        # BatchNorm1d default init: weight(gamma)=1, bias(beta)=0
        "g0": jnp.ones((hidden_dim,), jnp.float32),
        "be0": jnp.zeros((hidden_dim,), jnp.float32),
        "w1": w1, "b1": b1,
        "g1": jnp.ones((hidden_dim,), jnp.float32),
        "be1": jnp.zeros((hidden_dim,), jnp.float32),
        "w2": w2, "b2": b2,
    }

    x = jax.random.normal(k_x, (n, input_dim), jnp.float32)

    # One-time param prep (hoisted out of the per-call path).
    prepped = jax.tree_util.tree_map(jax.block_until_ready, prepare_params(params))

    out = mlp_forward(x, prepped)
    out = jax.block_until_ready(out)

    ref = _reference_forward(x, params)
    assert out.shape == (n, output_dim)
    assert jnp.allclose(out, ref, atol=1e-4, rtol=1e-4), "mismatch vs JAX reference"

    print("KERNEL_OK")
</pallas_src>

<mosaic_0001>
module attributes {stable_mosaic.version = 11 : i64} {
  func.func @_mlp_kernel(%arg0: memref<8x16xf32, #tpu.memory_space<vmem>>, %arg1: memref<16x32xf32, #tpu.memory_space<vmem>>, %arg2: memref<32x32xf32, #tpu.memory_space<vmem>>, %arg3: memref<32x8xf32, #tpu.memory_space<vmem>>, %arg4: memref<8x32xf32, #tpu.memory_space<vmem>>, %arg5: memref<8x8xf32, #tpu.memory_space<vmem>>) attributes {dimension_semantics = [], scalar_prefetch = 0 : i64, scratch_operands = 0 : i64, tpu.core_type = #tpu.core_type<tc>} {
    %c0 = arith.constant 0 : index
    %c0_0 = arith.constant 0 : index
    %0 = vector.load %arg4[%c0, %c0_0] : memref<8x32xf32, #tpu.memory_space<vmem>>, vector<8x32xf32>
    %c0_1 = arith.constant 0 : index
    %c0_2 = arith.constant 0 : index
    %1 = vector.load %arg0[%c0_1, %c0_2] : memref<8x16xf32, #tpu.memory_space<vmem>>, vector<8x16xf32>
    %c0_3 = arith.constant 0 : index
    %c0_4 = arith.constant 0 : index
    %2 = vector.load %arg1[%c0_3, %c0_4] : memref<16x32xf32, #tpu.memory_space<vmem>>, vector<16x32xf32>
    %3 = vector.extract_strided_slice %0 {offsets = [0, 0], sizes = [1, 32], strides = [1, 1]} : vector<8x32xf32> to vector<1x32xf32>
    %4 = vector.extract_strided_slice %0 {offsets = [1, 0], sizes = [1, 32], strides = [1, 1]} : vector<8x32xf32> to vector<1x32xf32>
    %5 = vector.extract_strided_slice %0 {offsets = [2, 0], sizes = [1, 32], strides = [1, 1]} : vector<8x32xf32> to vector<1x32xf32>
    %cst = arith.constant dense<0.000000e+00> : vector<8x32xf32>
    %6 = tpu.matmul %1, %2, %cst {dimension_numbers = #tpu.dot_dimension_numbers<[1], [0], [0], [1], [0, 0, 1, 1], [], []>} : vector<8x16xf32>, vector<16x32xf32>, vector<8x32xf32> -> vector<8x32xf32>
    %7 = vector.broadcast %3 : vector<1x32xf32> to vector<8x32xf32>
    %8 = arith.addf %6, %7 : vector<8x32xf32>
    %cst_5 = arith.constant dense<0.000000e+00> : vector<32xf32>
    %9 = vector.multi_reduction <add>, %8, %cst_5 [0] : vector<8x32xf32> to vector<32xf32>
    %10 = vector.shape_cast %9 : vector<32xf32> to vector<1x32xf32>
    %11 = arith.mulf %8, %8 : vector<8x32xf32>
    %cst_6 = arith.constant dense<0.000000e+00> : vector<32xf32>
    %12 = vector.multi_reduction <add>, %11, %cst_6 [0] : vector<8x32xf32> to vector<32xf32>
    %13 = vector.shape_cast %12 : vector<32xf32> to vector<1x32xf32>
    %cst_7 = arith.constant 1.250000e-01 : f32
    %14 = vector.broadcast %cst_7 : f32 to vector<1x32xf32>
    %15 = arith.mulf %10, %14 : vector<1x32xf32>
    %cst_8 = arith.constant 1.250000e-01 : f32
    %16 = vector.broadcast %cst_8 : f32 to vector<1x32xf32>
    %17 = arith.mulf %13, %16 : vector<1x32xf32>
    %18 = arith.mulf %15, %15 : vector<1x32xf32>
    %19 = arith.subf %17, %18 : vector<1x32xf32>
    %cst_9 = arith.constant 9.99999974E-6 : f32
    %20 = vector.broadcast %cst_9 : f32 to vector<1x32xf32>
    %21 = arith.addf %19, %20 : vector<1x32xf32>
    %22 = math.rsqrt %21 : vector<1x32xf32>
    %23 = arith.mulf %4, %22 : vector<1x32xf32>
    %24 = arith.mulf %15, %23 : vector<1x32xf32>
    %25 = arith.subf %5, %24 : vector<1x32xf32>
    %26 = vector.broadcast %23 : vector<1x32xf32> to vector<8x32xf32>
    %27 = arith.mulf %8, %26 : vector<8x32xf32>
    %28 = vector.broadcast %25 : vector<1x32xf32> to vector<8x32xf32>
    %29 = arith.addf %27, %28 : vector<8x32xf32>
    %cst_10 = arith.constant 0.000000e+00 : f32
    %30 = vector.broadcast %cst_10 : f32 to vector<8x32xf32>
    %31 = arith.maximumf %29, %30 : vector<8x32xf32>
    %c0_11 = arith.constant 0 : index
    %c0_12 = arith.constant 0 : index
    %32 = vector.load %arg2[%c0_11, %c0_12] : memref<32x32xf32, #tpu.memory_space<vmem>>, vector<32x32xf32>
    %33 = vector.extract_strided_slice %0 {offsets = [3, 0], sizes = [1, 32], strides = [1, 1]} : vector<8x32xf32> to vector<1x32xf32>
    %34 = vector.extract_strided_slice %0 {offsets = [4, 0], sizes = [1, 32], strides = [1, 1]} : vector<8x32xf32> to vector<1x32xf32>
    %35 = vector.extract_strided_slice %0 {offsets = [5, 0], sizes = [1, 32], strides = [1, 1]} : vector<8x32xf32> to vector<1x32xf32>
    %cst_13 = arith.constant dense<0.000000e+00> : vector<8x32xf32>
    %36 = tpu.matmul %31, %32, %cst_13 {dimension_numbers = #tpu.dot_dimension_numbers<[1], [0], [0], [1], [0, 0, 1, 1], [], []>} : vector<8x32xf32>, vector<32x32xf32>, vector<8x32xf32> -> vector<8x32xf32>
    %37 = vector.broadcast %33 : vector<1x32xf32> to vector<8x32xf32>
    %38 = arith.addf %36, %37 : vector<8x32xf32>
    %cst_14 = arith.constant dense<0.000000e+00> : vector<32xf32>
    %39 = vector.multi_reduction <add>, %38, %cst_14 [0] : vector<8x32xf32> to vector<32xf32>
    %40 = vector.shape_cast %39 : vector<32xf32> to vector<1x32xf32>
    %41 = arith.mulf %38, %38 : vector<8x32xf32>
    %cst_15 = arith.constant dense<0.000000e+00> : vector<32xf32>
    %42 = vector.multi_reduction <add>, %41, %cst_15 [0] : vector<8x32xf32> to vector<32xf32>
    %43 = vector.shape_cast %42 : vector<32xf32> to vector<1x32xf32>
    %cst_16 = arith.constant 1.250000e-01 : f32
    %44 = vector.broadcast %cst_16 : f32 to vector<1x32xf32>
    %45 = arith.mulf %40, %44 : vector<1x32xf32>
    %cst_17 = arith.constant 1.250000e-01 : f32
    %46 = vector.broadcast %cst_17 : f32 to vector<1x32xf32>
    %47 = arith.mulf %43, %46 : vector<1x32xf32>
    %48 = arith.mulf %45, %45 : vector<1x32xf32>
    %49 = arith.subf %47, %48 : vector<1x32xf32>
    %cst_18 = arith.constant 9.99999974E-6 : f32
    %50 = vector.broadcast %cst_18 : f32 to vector<1x32xf32>
    %51 = arith.addf %49, %50 : vector<1x32xf32>
    %52 = math.rsqrt %51 : vector<1x32xf32>
    %53 = arith.mulf %34, %52 : vector<1x32xf32>
    %54 = arith.mulf %45, %53 : vector<1x32xf32>
    %55 = arith.subf %35, %54 : vector<1x32xf32>
    %56 = vector.broadcast %53 : vector<1x32xf32> to vector<8x32xf32>
    %57 = arith.mulf %38, %56 : vector<8x32xf32>
    %58 = vector.broadcast %55 : vector<1x32xf32> to vector<8x32xf32>
    %59 = arith.addf %57, %58 : vector<8x32xf32>
    %cst_19 = arith.constant 0.000000e+00 : f32
    %60 = vector.broadcast %cst_19 : f32 to vector<8x32xf32>
    %61 = arith.maximumf %59, %60 : vector<8x32xf32>
    %c0_20 = arith.constant 0 : index
    %c0_21 = arith.constant 0 : index
    %62 = vector.load %arg3[%c0_20, %c0_21] : memref<32x8xf32, #tpu.memory_space<vmem>>, vector<32x8xf32>
    %cst_22 = arith.constant dense<0.000000e+00> : vector<8x8xf32>
    %63 = tpu.matmul %61, %62, %cst_22 {dimension_numbers = #tpu.dot_dimension_numbers<[1], [0], [0], [1], [0, 0, 1, 1], [], []>} : vector<8x32xf32>, vector<32x8xf32>, vector<8x8xf32> -> vector<8x8xf32>
    %64 = vector.extract_strided_slice %0 {offsets = [6, 0], sizes = [1, 8], strides = [1, 1]} : vector<8x32xf32> to vector<1x8xf32>
    %65 = vector.broadcast %64 : vector<1x8xf32> to vector<8x8xf32>
    %66 = arith.addf %63, %65 : vector<8x8xf32>
    %c0_23 = arith.constant 0 : index
    %c0_24 = arith.constant 0 : index
    %67 = vector.load %arg5[%c0_23, %c0_24] : memref<8x8xf32, #tpu.memory_space<vmem>>, vector<8x8xf32>
    tpu.vector_store %arg5[%c0_23, %c0_24], %66 {strides = array<i32>} : memref<8x8xf32, #tpu.memory_space<vmem>>, vector<8x8xf32>,
    return
  }
}

</mosaic_0001>

<llo_original>
// kernel: mlp_forward.1
$region0: #{mlp_forward.1}
  #allocation0 [shape = 'u32[]', space=smem, size = 0x4, offset = 0x4, fixed_abs, tag = 'smem constant byte address 0x4 - core index']
  #allocation1 [shape = 'u32[72,128]{1,0:T(1,128)}', space=vmem, size = 0x9000, scoped, tag = 'internal scratch']
  %s0 = inlined_call_operand.vmem [shape: f32[8,16], index: 0, kind: input, shape index: {}]
  %s1 = inlined_call_operand.hbm [shape: f32[16,32], index: 1, kind: input, shape index: {}]
  %s2 = inlined_call_operand.vmem [shape: f32[32,32], index: 2, kind: input, shape index: {}]
  %s3 = inlined_call_operand.vmem [shape: f32[32,8], index: 3, kind: input, shape index: {}]
  %s4 = inlined_call_operand.hbm [shape: f32[8,32], index: 4, kind: input, shape index: {}]
  %s5 = inlined_call_operand.hbm [shape: f32[8,8], index: 5, kind: output, shape index: {}]
  %s6 = sld [smem:[#allocation0]]
  $region38: #{mlp_forward.1} parent=0
    _
  %s8 = ssub.s32 1, %s6
  %s9 = scalar_select 0, %s8, %s6
  $region1: #{mlp_forward.1} parent=0
    #allocation2 [shape = 'u8[8192]{0}', space=vmem, size = 0x2000, scoped, tag = 'input window, operand 1, single buffered']
    #allocation3 [shape = 's32[1]{0}', space=sflag, size = 0x4, scoped, tag = 'scoped memory for mlp_forward.1']
    #allocation4 [shape = 's32[1]{0}', space=sflag, size = 0x4, scoped, tag = 'scoped memory for mlp_forward.1']
    #allocation5 [shape = 'u8[4096]{0}', space=vmem, size = 0x1000, scoped, tag = 'input window, operand 4, single buffered']
    #allocation6 [shape = 's32[1]{0}', space=sflag, size = 0x4, scoped, tag = 'scoped memory for mlp_forward.1']
    #allocation7 [shape = 'u8[4096]{0}', space=vmem, size = 0x1000, scoped, tag = 'output window, operand 0, single buffered']
    %10 = vsyncpa [#allocation3], 0
    %11 = vsyncpa [#allocation6], 0
    %12 = vsyncpa [#allocation4], 0
    // Predicated region
    $region2: #{mlp_forward.1} parent=1 // pred_check
      _
    $region3: #{mlp_forward.1} parent=1 // pred_check_branch
      %14 = sbr.rel (0) target = $region5
    $region4: #{mlp_forward.1} parent=1 // pred_region
      _
    $region5: #{mlp_forward.1} parent=1 // pred_fallthru
      _
    // Predicated region
    $region6: #{mlp_forward.1} parent=1 // pred_check
      _
    $region7: #{mlp_forward.1} parent=1 // pred_check_branch
      %16 = sbr.rel (0) target = $region9
    $region8: #{mlp_forward.1} parent=1 // pred_region
      %18 = vsyncadd [#allocation3], 0
      %s19 = sshll.u32 %s1, 4
      %s20 = int_to_ptr.hbm [resolvable:$true] %s19
      %s21 = sshll.u32 [#allocation2], 4
      %s22 = int_to_ptr.vmem [resolvable:$true] %s21
      %27 = dma.hbm_to_vmem [thread:$0]  %s20, 256, %s22, [#allocation3], 128, 128, 8
    $region9: #{mlp_forward.1} parent=1 // pred_fallthru
      _
    // Predicated region
    $region10: #{mlp_forward.1} parent=1 // pred_check
      _
    $region11: #{mlp_forward.1} parent=1 // pred_check_branch
      %29 = sbr.rel (0) target = $region13
    $region12: #{mlp_forward.1} parent=1 // pred_region
      _
    $region13: #{mlp_forward.1} parent=1 // pred_fallthru
      _
    // Predicated region
    $region14: #{mlp_forward.1} parent=1 // pred_check
      _
    $region15: #{mlp_forward.1} parent=1 // pred_check_branch
      %31 = sbr.rel (0) target = $region17
    $region16: #{mlp_forward.1} parent=1 // pred_region
      _
    $region17: #{mlp_forward.1} parent=1 // pred_fallthru
      _
    // Predicated region
    $region18: #{mlp_forward.1} parent=1 // pred_check
      _
    $region19: #{mlp_forward.1} parent=1 // pred_check_branch
      %33 = sbr.rel (0) target = $region21
    $region20: #{mlp_forward.1} parent=1 // pred_region
      %35 = vsyncadd [#allocation6], 0
      %s37 = sshll.u32 %s4, 4
      %s38 = int_to_ptr.hbm [resolvable:$true] %s37
      %s39 = sshll.u32 [#allocation5], 4
      %s40 = int_to_ptr.vmem [resolvable:$true] %s39
      %42 = dma.hbm_to_vmem [thread:$0]  %s38, 128, %s40, [#allocation6]
    $region21: #{mlp_forward.1} parent=1 // pred_fallthru
      _
    // Predicated region
    $region22: #{mlp_forward.1} parent=1 // pred_check
      _
    $region23: #{mlp_forward.1} parent=1 // pred_check_branch
      %44 = sbr.rel (0) target = $region25
    $region24: #{mlp_forward.1} parent=1 // pred_region
      %46 = dma.done [#allocation3], 256
    $region25: #{mlp_forward.1} parent=1 // pred_fallthru
      _
    // Predicated region
    $region26: #{mlp_forward.1} parent=1 // pred_check
      _
    $region27: #{mlp_forward.1} parent=1 // pred_check_branch
      %48 = sbr.rel (0) target = $region29
    $region28: #{mlp_forward.1} parent=1 // pred_region
      %50 = dma.done [#allocation6], 128
    $region29: #{mlp_forward.1} parent=1 // pred_fallthru
      _
    %v51 = vld [vmem:[#allocation5] sm:$0xff]
    %v52 = vld [vmem:[%s0] sm:$0xff]
    %v53 = vld [vmem:[#allocation2] sm:$0xff]
    %v54 = vld [vmem:[#allocation2 + $0x8] sm:$0xff]
    %v55 = vperm.slane %v51, 0
    %vm56 = vcmask 130048
    %v58 = vsel %vm56, %v52, 0
    %60 = vmatpush.msra.mxu0 0.0
    %61 = vmatpush.msra.mxu0 0.0
    %62 = vmatpush.msra.mxu0 0.0
    %63 = vmatpush.msra.mxu0 0.0
    %64 = vmatpush.msra.mxu0 0.0
    %65 = vmatpush.msra.mxu0 0.0
    %66 = vmatpush.msra.mxu0 0.0
    %67 = vmatpush.msra.mxu0 0.0
    %68 = vmatpush.msra.mxu0 0.0
    %69 = vmatpush.msra.mxu0 0.0
    %70 = vmatpush.msra.mxu0 0.0
    %71 = vmatpush.msra.mxu0 0.0
    %72 = vmatpush.msra.mxu0 0.0
    %73 = vmatpush.msra.mxu0 0.0
    %74 = vmatpush.msra.mxu0 %v54
    %75 = vmatpush.msra.mxu0 %v53
    %76 = vmatmul.f32.gmra.mxu0 %v58
    %v77 = vpop.f32.mrf.mxu0
    %v78 = vadd.f32 %v55, %v77
    %79 = vdwg.mxu0
    %vm80 = vcmask 261120
    %v81 = vsel %vm80, %v78, 0.0
    %v82 = vrot.slane %v81, 4
    %v83 = vadd.f32 %v81, %v82
    %v84 = vrot.slane %v83, 2
    %v85 = vadd.f32 %v83, %v84
    %v86 = vrot.slane %v85, 1
    %v87 = vadd.f32 %v85, %v86
    %v88 = vmul.f32 %v78, %v78
    %v89 = vsel %vm80, %v88, 0.0
    %v90 = vrot.slane %v89, 4
    %v91 = vadd.f32 %v89, %v90
    %v92 = vrot.slane %v91, 2
    %v93 = vadd.f32 %v91, %v92
    %v94 = vrot.slane %v93, 1
    %v95 = vadd.f32 %v93, %v94
    %v96 = vmul.f32 %v87, 0.125
    %v97 = vmul.f32 %v95, 0.125
    %v98 = vmul.f32 %v96, %v96
    %v99 = vsub.f32 %v97, %v98
    %v100 = vadd.f32 %v99, 1e-05
    %v101 = vrsqrt.pop %v100
    %v102 = vmul.f32 %v101, %v100
    %v103 = vmul.f32 %v102, %v101
    %v104 = vmul.f32 0.5, %v103
    %v105 = vsub.f32 1.5, %v104
    %v106 = vmul.f32 %v101, %v105
    %vm107 = vweird.f32 %v100
    %vm108 = vweird.f32 %v101
    %vm109 = vmor %vm107, %vm108
    %v110 = vsel %vm109, %v101, %v106
    %v111 = vmul.f32 %v51, %v110
    %v112 = vmul.f32 %v96, %v111
    %v114 = vrot.slane %v112, 7
    %v116 = vsub.f32 %v51, %v114
    %v117 = vperm.slane %v111, 1
    %v118 = vmul.f32 %v78, %v117
    %v119 = vperm.slane %v116, 2
    %v120 = vadd.f32 %v118, %v119
    %v121 = vmax.f32 %v120, 0.0
    %v122 = vld [vmem:[%s2] sm:$0xff]
    %v123 = vld [vmem:[%s2 + $0x8] sm:$0xff]
    %v124 = vld [vmem:[%s2 + $0x10] sm:$0xff]
    %v125 = vld [vmem:[%s2 + $0x18] sm:$0xff]
    %v126 = vperm.slane %v51, 3
    %v128 = vsel %vm80, %v121, 0
    %130 = vmatpush.msra.mxu0 0.0
    %131 = vmatpush.msra.mxu0 0.0
    %132 = vmatpush.msra.mxu0 0.0
    %133 = vmatpush.msra.mxu0 0.0
    %134 = vmatpush.msra.mxu0 0.0
    %135 = vmatpush.msra.mxu0 0.0
    %136 = vmatpush.msra.mxu0 0.0
    %137 = vmatpush.msra.mxu0 0.0
    %138 = vmatpush.msra.mxu0 0.0
    %139 = vmatpush.msra.mxu0 0.0
    %140 = vmatpush.msra.mxu0 0.0
    %141 = vmatpush.msra.mxu0 0.0
    %142 = vmatpush.msra.mxu0 %v125
    %143 = vmatpush.msra.mxu0 %v124
    %144 = vmatpush.msra.mxu0 %v123
    %145 = vmatpush.msra.mxu0 %v122
    %146 = vmatmul.f32.gmra.mxu0 %v128
    %v147 = vpop.f32.mrf.mxu0
    %v148 = vadd.f32 %v126, %v147
    %149 = vdwg.mxu0
    %v150 = vsel %vm80, %v148, 0.0
    %v151 = vrot.slane %v150, 4
    %v152 = vadd.f32 %v150, %v151
    %v153 = vrot.slane %v152, 2
    %v154 = vadd.f32 %v152, %v153
    %v155 = vrot.slane %v154, 1
    %v156 = vadd.f32 %v154, %v155
    %v157 = vmul.f32 %v148, %v148
    %v158 = vsel %vm80, %v157, 0.0
    %v159 = vrot.slane %v158, 4
    %v160 = vadd.f32 %v158, %v159
    %v161 = vrot.slane %v160, 2
    %v162 = vadd.f32 %v160, %v161
    %v163 = vrot.slane %v162, 1
    %v164 = vadd.f32 %v162, %v163
    %v165 = vmul.f32 %v156, 0.125
    %v166 = vmul.f32 %v164, 0.125
    %v167 = vmul.f32 %v165, %v165
    %v168 = vsub.f32 %v166, %v167
    %v169 = vadd.f32 %v168, 1e-05
    %v170 = vrsqrt.pop %v169
    %v171 = vmul.f32 %v170, %v169
    %v172 = vmul.f32 %v171, %v170
    %v173 = vmul.f32 0.5, %v172
    %v174 = vsub.f32 1.5, %v173
    %v175 = vmul.f32 %v170, %v174
    %vm176 = vweird.f32 %v169
    %vm177 = vweird.f32 %v170
    %vm178 = vmor %vm176, %vm177
    %v179 = vsel %vm178, %v170, %v175
    %v180 = vmul.f32 %v51, %v179
    %v181 = vmul.f32 %v165, %v180
    %v183 = vrot.slane %v181, 7
    %v185 = vsub.f32 %v51, %v183
    %v186 = vperm.slane %v180, 4
    %v187 = vmul.f32 %v148, %v186
    %v188 = vperm.slane %v185, 5
    %v189 = vadd.f32 %v187, %v188
    %v190 = vmax.f32 %v189, 0.0
    %v191 = vld [vmem:[%s3] sm:$0xff]
    %v192 = vld [vmem:[%s3 + $0x8] sm:$0xff]
    %v193 = vld [vmem:[%s3 + $0x10] sm:$0xff]
    %v194 = vld [vmem:[%s3 + $0x18] sm:$0xff]
    %v195 = vperm.slane %v51, 6
    %v197 = vsel %vm80, %v190, 0
    %199 = vmatpush.msra.mxu0 0.0
    %200 = vmatpush.msra.mxu0 0.0
    %201 = vmatpush.msra.mxu0 0.0
    %202 = vmatpush.msra.mxu0 0.0
    %203 = vmatpush.msra.mxu0 0.0
    %204 = vmatpush.msra.mxu0 0.0
    %205 = vmatpush.msra.mxu0 0.0
    %206 = vmatpush.msra.mxu0 0.0
    %207 = vmatpush.msra.mxu0 0.0
    %208 = vmatpush.msra.mxu0 0.0
    %209 = vmatpush.msra.mxu0 0.0
    %210 = vmatpush.msra.mxu0 0.0
    %211 = vmatpush.msra.mxu0 %v194
    %212 = vmatpush.msra.mxu0 %v193
    %213 = vmatpush.msra.mxu0 %v192
    %214 = vmatpush.msra.mxu0 %v191
    %215 = vmatmul.f32.gmra.mxu0 %v197
    %v216 = vpop.f32.mrf.mxu0
    %v217 = vadd.f32 %v195, %v216
    %218 = vdwg.mxu0
    %vm219 = vcmask 64512
    %220 = vst.msk [vmem:[#allocation7] sm:$0xff] %vm219, %v217
    // Predicated region
    $region30: #{mlp_forward.1} parent=1 // pred_check
      _
    $region31: #{mlp_forward.1} parent=1 // pred_check_branch
      %222 = sbr.rel (0) target = $region33
    $region32: #{mlp_forward.1} parent=1 // pred_region
      %224 = vsyncadd [#allocation4], 0
      %s226 = sshll.u32 [#allocation7], 4
      %s227 = int_to_ptr.vmem [resolvable:$true] %s226
      %s228 = sshll.u32 %s5, 4
      %s229 = int_to_ptr.hbm [resolvable:$true] %s228
      %231 = dma.vmem_to_hbm [thread:$0]  %s227, 128, %s229, [#allocation4]
    $region33: #{mlp_forward.1} parent=1 // pred_fallthru
      _
    // Predicated region
    $region34: #{mlp_forward.1} parent=1 // pred_check
      _
    $region35: #{mlp_forward.1} parent=1 // pred_check_branch
      %233 = sbr.rel (0) target = $region37
    $region36: #{mlp_forward.1} parent=1 // pred_region
      %235 = dma.done [#allocation4], 128
    $region37: #{mlp_forward.1} parent=1 // pred_fallthru
      _
    %236 = vsyncpa [#allocation3], 1
    %237 = vsyncpa [#allocation6], 1
    %238 = vsyncpa [#allocation4], 1

</llo_original>
